<compile_context>
chip_gen: v6e
topology: v6e:2x2x1
jax: 0.10.0
libtpu: 0.0.40
codegen_flags: <defaults>
</compile_context>

<pallas_src>
import jax
import jax.numpy as jnp
from jax.experimental import pallas as pl
from jax.experimental.pallas import tpu as pltpu


def _msevar_kernel(vw_ref, mv_ref, tgt_ref, var_ref, out_ref):
    # vw_ref : SMEM (1,)        scalar var_weight (scalar-prefetched)
    # mv_ref : VMEM (TILE_N, D) multi_value tile (native dtype)
    # tgt_ref: VMEM (TILE_N, D) target tile (native dtype)
    # var_ref: VMEM (TILE_N, 1) var column tile (native dtype)
    # out_ref: VMEM (8, D)      per-tile partial sums (f32, lane-dense)
    tile_n, d = mv_ref.shape
    vw = vw_ref[0]

    var_wei = vw * var_ref[...].astype(jnp.float32)                  # (TILE_N, 1)
    diff = mv_ref[...].astype(jnp.float32) - tgt_ref[...].astype(jnp.float32)
    loss1 = jnp.exp(-var_wei) * (diff * diff)                        # (TILE_N, D)

    # Fold rows in groups of 8: each (8, D) slab is whole vregs, so this is
    # pure VALU adds with no cross-lane/sublane (XLU) reduction.
    part = jnp.sum(loss1.reshape(tile_n // 8, 8, d), axis=0)         # (8, D)
    # '+ var_wei' broadcast folded algebraically: broadcasting the folded
    # (8, 1) column over D lanes contributes exactly D * sum(var_wei).
    var_part = jnp.sum(var_wei.reshape(tile_n // 8, 8, 1), axis=0)   # (8, 1)

    out_ref[...] = part + var_part


def _round_up(x, m):
    return ((x + m - 1) // m) * m


def _choose_tile_n(n, d):
    # ~4 MiB f32 per streaming input tile: with 2 big inputs x 2 pipeline
    # buffers plus f32 intermediates this stays well under VMEM limits on
    # v5e/v6e/v7x while being big enough to amortize the ~0.35 us per-step
    # pipeline overhead (<~7% at HBM roofline).
    budget_bytes = 4 * 1024 * 1024
    tile = max(8, budget_bytes // (d * 4))
    tile = min(tile, _round_up(n, 8))
    return max(8, (tile // 8) * 8)


def msevar_loss(multi_value, target, var, var_weight):
    """Pallas implementation of MSEVAR.forward. Returns a scalar f32."""
    n, d = multi_value.shape
    assert target.shape == (n, d)
    var2d = jnp.reshape(var, (-1, 1))                     # glue: .reshape(-1, 1)
    assert var2d.shape[0] == n

    tile_n = _choose_tile_n(n, d)
    n_pad = _round_up(n, tile_n)
    if n_pad != n:
        # Zero rows contribute 0 to both loss terms -> padding is exact.
        pad = ((0, n_pad - n), (0, 0))
        multi_value = jnp.pad(multi_value, pad)
        target = jnp.pad(target, pad)
        var2d = jnp.pad(var2d, pad)
    num_tiles = n_pad // tile_n

    vw = jnp.asarray([var_weight], dtype=jnp.float32)     # scalar param -> SMEM

    partials = pl.pallas_call(
        _msevar_kernel,
        out_shape=jax.ShapeDtypeStruct((num_tiles * 8, d), jnp.float32),
        grid_spec=pltpu.PrefetchScalarGridSpec(
            num_scalar_prefetch=1,
            grid=(num_tiles,),
            in_specs=[
                pl.BlockSpec((tile_n, d), lambda i, vw_ref: (i, 0)),  # multi_value
                pl.BlockSpec((tile_n, d), lambda i, vw_ref: (i, 0)),  # target
                pl.BlockSpec((tile_n, 1), lambda i, vw_ref: (i, 0)),  # var column
            ],
            out_specs=pl.BlockSpec((8, d), lambda i, vw_ref: (i, 0)),
        ),
        compiler_params=pltpu.CompilerParams(
            dimension_semantics=("parallel",),   # row tiles are independent -> megacore
            vmem_limit_bytes=48 << 20,           # above scoped defaults, safe on all chips
        ),
    )(vw, multi_value, target, var2d)

    # Tiny epilogue reduce in XLA; divide by the TRUE (unpadded) element count.
    return jnp.sum(partials) / jnp.float32(n * d)


def msevar_ref(multi_value, target, var, var_weight):
    """Pure-JAX reference mirroring the PyTorch forward."""
    var_wei = (var_weight * var).reshape(-1, 1)
    loss1 = jnp.exp(-var_wei) * (multi_value.astype(jnp.float32)
                                 - target.astype(jnp.float32)) ** 2
    loss = loss1 + var_wei
    return jnp.mean(loss)


if __name__ == "__main__":
    key = jax.random.PRNGKey(0)
    var_weight = 0.5  # deterministic "parameter" from __init__

    # Case 1: small aligned shape.
    k1, k2, k3, k4, k5, k6 = jax.random.split(key, 6)
    N1, D1 = 16, 128
    mv1 = jax.random.normal(k1, (N1, D1), dtype=jnp.float32)
    tg1 = jax.random.normal(k2, (N1, D1), dtype=jnp.float32)
    vr1 = jax.random.normal(k3, (N1,), dtype=jnp.float32)
    out1 = jax.block_until_ready(msevar_loss(mv1, tg1, vr1, var_weight))
    ref1 = msevar_ref(mv1, tg1, vr1, var_weight)
    assert jnp.allclose(out1, ref1, rtol=1e-5, atol=1e-5), (out1, ref1)

    # Case 2: non-multiple-of-8 rows (exercises the zero-padding path).
    N2, D2 = 20, 256
    mv2 = jax.random.normal(k4, (N2, D2), dtype=jnp.float32)
    tg2 = jax.random.normal(k5, (N2, D2), dtype=jnp.float32)
    vr2 = jax.random.normal(k6, (N2,), dtype=jnp.float32)
    out2 = jax.block_until_ready(msevar_loss(mv2, tg2, vr2, var_weight))
    ref2 = msevar_ref(mv2, tg2, vr2, var_weight)
    assert jnp.allclose(out2, ref2, rtol=1e-5, atol=1e-5), (out2, ref2)

    print("KERNEL_OK")
</pallas_src>

<mosaic_0001>
module attributes {stable_mosaic.version = 11 : i64} {
  func.func @_msevar_kernel(%arg0: i32, %arg1: memref<1xf32, #tpu.memory_space<smem>>, %arg2: memref<16x128xf32, #tpu.memory_space<vmem>>, %arg3: memref<16x128xf32, #tpu.memory_space<vmem>>, %arg4: memref<16x1xf32, #tpu.memory_space<vmem>>, %arg5: memref<8x128xf32, #tpu.memory_space<vmem>>) attributes {dimension_semantics = [#tpu.dimension_semantics<parallel>], iteration_bounds = array<i64: 1>, scalar_prefetch = 1 : i64, scratch_operands = 0 : i64, tpu.core_type = #tpu.core_type<tc>, window_params = [{transform_indices = @transform_0, window_bounds = array<i64: 16, 128>}, {transform_indices = @transform_1, window_bounds = array<i64: 16, 128>}, {transform_indices = @transform_2, window_bounds = array<i64: 16, 1>}, {transform_indices = @transform_3, window_bounds = array<i64: 8, 128>}]} {
    %c0 = arith.constant 0 : index
    %0 = memref.load %arg1[%c0] : memref<1xf32, #tpu.memory_space<smem>>
    %c0_0 = arith.constant 0 : index
    %c0_1 = arith.constant 0 : index
    %1 = vector.load %arg4[%c0_0, %c0_1] : memref<16x1xf32, #tpu.memory_space<vmem>>, vector<16x1xf32>
    %2 = vector.broadcast %0 : f32 to vector<16x1xf32>
    %3 = arith.mulf %2, %1 : vector<16x1xf32>
    %c0_2 = arith.constant 0 : index
    %c0_3 = arith.constant 0 : index
    %4 = vector.load %arg2[%c0_2, %c0_3] : memref<16x128xf32, #tpu.memory_space<vmem>>, vector<16x128xf32>
    %c0_4 = arith.constant 0 : index
    %c0_5 = arith.constant 0 : index
    %5 = vector.load %arg3[%c0_4, %c0_5] : memref<16x128xf32, #tpu.memory_space<vmem>>, vector<16x128xf32>
    %6 = arith.subf %4, %5 : vector<16x128xf32>
    %cst = arith.constant 0.000000e+00 : f32
    %7 = vector.broadcast %cst : f32 to vector<16x1xf32>
    %8 = arith.subf %7, %3 : vector<16x1xf32>
    %9 = math.exp %8 : vector<16x1xf32>
    %10 = arith.mulf %6, %6 : vector<16x128xf32>
    %11 = vector.broadcast %9 : vector<16x1xf32> to vector<16x128xf32>
    %12 = arith.mulf %11, %10 : vector<16x128xf32>
    %13 = vector.shape_cast %12 : vector<16x128xf32> to vector<2x8x128xf32>
    %cst_6 = arith.constant dense<0.000000e+00> : vector<8x128xf32>
    %14 = vector.multi_reduction <add>, %13, %cst_6 [0] : vector<2x8x128xf32> to vector<8x128xf32>
    %15 = vector.shape_cast %3 : vector<16x1xf32> to vector<2x8x1xf32>
    %cst_7 = arith.constant dense<0.000000e+00> : vector<8x1xf32>
    %16 = vector.multi_reduction <add>, %15, %cst_7 [0] : vector<2x8x1xf32> to vector<8x1xf32>
    %17 = vector.broadcast %16 : vector<8x1xf32> to vector<8x128xf32>
    %18 = arith.addf %14, %17 : vector<8x128xf32>
    %c0_8 = arith.constant 0 : index
    %c0_9 = arith.constant 0 : index
    %19 = vector.load %arg5[%c0_8, %c0_9] : memref<8x128xf32, #tpu.memory_space<vmem>>, vector<8x128xf32>
    tpu.vector_store %arg5[%c0_8, %c0_9], %18 {strides = array<i32>} : memref<8x128xf32, #tpu.memory_space<vmem>>, vector<8x128xf32>,
    return
  }
  func.func @transform_0(%arg0: i32, %arg1: memref<1xf32, #tpu.memory_space<smem>>) -> (i32, i32) {
    %c0_i32 = arith.constant 0 : i32
    %c0_i32_0 = arith.constant 0 : i32
    return %arg0, %c0_i32 : i32, i32
  }
  func.func @transform_1(%arg0: i32, %arg1: memref<1xf32, #tpu.memory_space<smem>>) -> (i32, i32) {
    %c0_i32 = arith.constant 0 : i32
    %c0_i32_0 = arith.constant 0 : i32
    return %arg0, %c0_i32 : i32, i32
  }
  func.func @transform_2(%arg0: i32, %arg1: memref<1xf32, #tpu.memory_space<smem>>) -> (i32, i32) {
    %c0_i32 = arith.constant 0 : i32
    %c0_i32_0 = arith.constant 0 : i32
    return %arg0, %c0_i32 : i32, i32
  }
  func.func @transform_3(%arg0: i32, %arg1: memref<1xf32, #tpu.memory_space<smem>>) -> (i32, i32) {
    %c0_i32 = arith.constant 0 : i32
    %c0_i32_0 = arith.constant 0 : i32
    return %arg0, %c0_i32 : i32, i32
  }
}

</mosaic_0001>

<llo_original>
// kernel: tpu_custom_call.1
$region0: #{tpu_custom_call.1}
  #allocation0 [shape = 'u32[]', space=smem, size = 0x4, offset = 0x4, fixed_abs, tag = 'smem constant byte address 0x4 - core index']
  #allocation1 [shape = 'u32[144,128]{1,0:T(1,128)}', space=vmem, size = 0x12000, scoped, tag = 'internal scratch']
  #allocation2 [shape = 's32[1]{0}', space=sflag, size = 0x4, scoped, tag = 'scoped memory for tpu_custom_call.1']
  #allocation3 [shape = 'f32[1]{0:T(128)S(6)}', space=smem, size = 0x200, scoped, tag = 'prefetched SMEM operand 0']
  %s0 = inlined_call_operand.<no memory space> [shape: f32[1], index: 0, kind: input, shape index: {}]
  %s1 = inlined_call_operand.vmem [shape: f32[16,128], index: 1, kind: input, shape index: {}]
  %s2 = inlined_call_operand.hbm [shape: f32[16,128], index: 2, kind: input, shape index: {}]
  %s3 = inlined_call_operand.vmem [shape: f32[16,1], index: 3, kind: input, shape index: {}]
  %s4 = inlined_call_operand.hbm [shape: f32[8,128], index: 4, kind: output, shape index: {}]
  %s5 = sld [smem:[#allocation0]]
  $region26: #{tpu_custom_call.1} parent=0
    _
  %s7 = ssub.s32 1, %s5
  %s8 = scalar_select 0, %s7, %s5
  %9 = sst [smem:[#allocation3]] %s0
  $region1: #{tpu_custom_call.1} parent=0
    #allocation4 [shape = 'u8[8192]{0}', space=vmem, size = 0x2000, scoped, tag = 'input window, operand 2, single buffered']
    #allocation5 [shape = 's32[1]{0}', space=sflag, size = 0x4, scoped, tag = 'scoped memory for tpu_custom_call.1']
    #allocation6 [shape = 's32[1]{0}', space=sflag, size = 0x4, scoped, tag = 'scoped memory for tpu_custom_call.1']
    #allocation7 [shape = 'u8[4096]{0}', space=vmem, size = 0x1000, scoped, tag = 'output window, operand 0, single buffered']
    %10 = vsyncpa [#allocation5], 0
    %11 = vsyncpa [#allocation6], 0
    // Predicated region
    $region2: #{tpu_custom_call.1} parent=1 // pred_check
      _
    $region3: #{tpu_custom_call.1} parent=1 // pred_check_branch
      %13 = sbr.rel (0) target = $region5
    $region4: #{tpu_custom_call.1} parent=1 // pred_region
      _
    $region5: #{tpu_custom_call.1} parent=1 // pred_fallthru
      _
    // Predicated region
    $region6: #{tpu_custom_call.1} parent=1 // pred_check
      _
    $region7: #{tpu_custom_call.1} parent=1 // pred_check_branch
      %15 = sbr.rel (0) target = $region9
    $region8: #{tpu_custom_call.1} parent=1 // pred_region
      %s17 = ssub.s32 256, 256
      %18 = vsyncadd [#allocation5], %s17
      %s19 = sshll.u32 [#allocation4], 4
      %s20 = int_to_ptr.vmem [resolvable:$true] %s19
      %25 = dma.hbm_to_vmem [thread:$0]  %s2, 256, %s20, [#allocation5], 128, 128, 8
    $region9: #{tpu_custom_call.1} parent=1 // pred_fallthru
      _
    // Predicated region
    $region10: #{tpu_custom_call.1} parent=1 // pred_check
      _
    $region11: #{tpu_custom_call.1} parent=1 // pred_check_branch
      %27 = sbr.rel (0) target = $region13
    $region12: #{tpu_custom_call.1} parent=1 // pred_region
      _
    $region13: #{tpu_custom_call.1} parent=1 // pred_fallthru
      _
    // Predicated region
    $region14: #{tpu_custom_call.1} parent=1 // pred_check
      _
    $region15: #{tpu_custom_call.1} parent=1 // pred_check_branch
      %29 = sbr.rel (0) target = $region17
    $region16: #{tpu_custom_call.1} parent=1 // pred_region
      %30 = dma.done [#allocation5], 256
    $region17: #{tpu_custom_call.1} parent=1 // pred_fallthru
      _
    %s31 = sld [smem:[#allocation3]]
    %v32 = vld [vmem:[%s3] sm:$0xff]
    %v33 = vld [vmem:[%s3 + $0x8] sm:$0xff]
    %v34 = vstv %s31
    %v35 = vmul.f32 %v34, %v32
    %v36 = vmul.f32 %v34, %v33
    %v37 = vld [vmem:[%s1] sm:$0xff]
    %v38 = vld [vmem:[%s1 + $0x8] sm:$0xff]
    %v39 = vld [vmem:[#allocation4] sm:$0xff]
    %v40 = vld [vmem:[#allocation4 + $0x8] sm:$0xff]
    %v41 = vsub.f32 %v37, %v39
    %v42 = vsub.f32 %v38, %v40
    %v43 = vsub.f32 0.0, %v35
    %v44 = vsub.f32 0.0, %v36
    %v45 = vmul.f32 %v43, 1.442695
    %v46 = vpow.pop %v45
    %v47 = vmul.f32 %v44, 1.442695
    %v48 = vpow.pop %v47
    %v49 = vmul.f32 %v41, %v41
    %v50 = vmul.f32 %v42, %v42
    %52 = vset.pattern.permute.xlu0 0
    %53 = vperm.xlu0 %52, %v46
    %v54 = vpop.permute.xlu0 %53
    %57 = vset.pattern.permute.xlu0 0
    %58 = vperm.xlu0 %57, %v48
    %v59 = vpop.permute.xlu0 %58
    %v61 = vmul.f32 %v54, %v49
    %v62 = vmul.f32 %v59, %v50
    %v63 = vadd.f32 %v61, %v62
    %vm64 = vcmask 7168
    %v65 = vsel %vm64, %v35, 0.0
    %v66 = vsel %vm64, %v36, 0.0
    %v67 = vadd.f32 %v65, %v66
    %69 = vset.pattern.permute.xlu0 0
    %70 = vperm.xlu0 %69, %v67
    %v71 = vpop.permute.xlu0 %70
    %v73 = vadd.f32 %v63, %v71
    %74 = vst [vmem:[#allocation7] sm:$0xff] %v73
    // Predicated region
    $region18: #{tpu_custom_call.1} parent=1 // pred_check
      _
    $region19: #{tpu_custom_call.1} parent=1 // pred_check_branch
      %76 = sbr.rel (0) target = $region21
    $region20: #{tpu_custom_call.1} parent=1 // pred_region
      %s78 = ssub.s32 128, 128
      %79 = vsyncadd [#allocation6], %s78
      %s81 = sshll.u32 [#allocation7], 4
      %s82 = int_to_ptr.vmem [resolvable:$true] %s81
      %84 = dma.vmem_to_hbm [thread:$0]  %s82, 128, %s4, [#allocation6]
    $region21: #{tpu_custom_call.1} parent=1 // pred_fallthru
      _
    // Predicated region
    $region22: #{tpu_custom_call.1} parent=1 // pred_check
      _
    $region23: #{tpu_custom_call.1} parent=1 // pred_check_branch
      %86 = sbr.rel (0) target = $region25
    $region24: #{tpu_custom_call.1} parent=1 // pred_region
      %87 = dma.done [#allocation6], 128
    $region25: #{tpu_custom_call.1} parent=1 // pred_fallthru
      _
    %88 = vsyncpa [#allocation5], 1
    %89 = vsyncpa [#allocation6], 1

</llo_original>
